<compile_context>
chip_gen: v6e
topology: v6e:2x2x1
jax: 0.10.0
libtpu: 0.0.40
codegen_flags: <defaults>
</compile_context>

<pallas_src>
import jax
import jax.numpy as jnp
from jax import lax
from jax.experimental import pallas as pl
from jax.experimental.pallas import tpu as pltpu


KERNEL_SIZE = 3
STRIDES = (4, 5, 6, 8)
DILATIONS = (1, 2, 4)
_VMEM_LIMIT = 32 * 1024 * 1024


def _round_up(a, m):
    return ((a + m - 1) // m) * m


def _silu(y):
    # y * sigmoid(y); the reciprocal goes to the EUP slot (approx), off the VALU.
    return y * pl.reciprocal(1.0 + jnp.exp(-y), approx=True)


# ---------------------------------------------------------------------------
# input projection: Conv1d(1, C, K=3, padding=1), scalar signal -> (N, L, C)
# ---------------------------------------------------------------------------
def _input_proj_kernel(col_ref, w_ref, b_ref, o_ref):
    # col_ref: (1, K, T) im2col of the scalar signal; w_ref: (K, C); b_ref: (1, C)
    y = lax.dot_general(col_ref[0], w_ref[...],
                        (((0,), (0,)), ((), ())),
                        preferred_element_type=jnp.float32)          # (T, C)
    o_ref[0] = (y + b_ref[...]).astype(o_ref.dtype)


def input_proj_pallas(x_nl, w, b, *, tile=512):
    N, L = x_nl.shape
    C = w.shape[0]
    K = KERNEL_SIZE
    pad = K // 2

    T = min(tile, _round_up(L, 128))                # last dim of blocks: 128-multiple
    n_t = -(-L // T)
    Lp = n_t * T

    xpad = jnp.pad(x_nl, ((0, 0), (pad, pad)))
    cols = jnp.stack([xpad[:, k:k + L] for k in range(K)], axis=1)   # (N, K, L)
    cols = jnp.pad(cols, ((0, 0), (0, 0), (0, Lp - L)))
    wk = jnp.transpose(w[:, 0, :], (1, 0))                           # (K, C)
    bk = b.reshape(1, C)

    cost = pl.CostEstimate(
        flops=int(2 * N * Lp * K * C),
        transcendentals=0,
        bytes_accessed=int(4 * (cols.size + wk.size + N * Lp * C)))

    out = pl.pallas_call(
        _input_proj_kernel,
        out_shape=jax.ShapeDtypeStruct((N, Lp, C), jnp.float32),
        grid_spec=pltpu.PrefetchScalarGridSpec(
            num_scalar_prefetch=0,
            grid=(N, n_t),
            in_specs=[
                pl.BlockSpec((1, K, T), lambda n, t: (n, 0, t)),
                pl.BlockSpec((K, C), lambda n, t: (0, 0)),
                pl.BlockSpec((1, C), lambda n, t: (0, 0)),
            ],
            out_specs=pl.BlockSpec((1, T, C), lambda n, t: (n, t, 0)),
        ),
        compiler_params=pltpu.CompilerParams(
            dimension_semantics=("parallel", "parallel"),
            vmem_limit_bytes=_VMEM_LIMIT),
        cost_estimate=cost,
    )(cols, wk, bk)
    return out[:, :L, :]


# ---------------------------------------------------------------------------
# fused ConvBlock kernel:
#   NL x [ pad(d) -> Conv1d(dilation=d) -> SiLU -> +residual ]  then
#   pad(down_pad) -> Conv1d(stride=s)
# The same kernel with NL=0, down_pad=2, s=2 implements the final_conv.
# ---------------------------------------------------------------------------
def _make_block_kernel(*, dilations, stride, down_pad, C, L, T, WP, OFF, ROWS, fuse):
    K = KERNEL_SIZE
    NL = len(dilations)
    H = sum(dilations)              # dilated-stack halo per side
    s = stride
    p = down_pad
    TS = T * s                      # input rows advanced per output tile

    def kernel(*refs):
        x_hbm = refs[0]
        if NL > 0:
            wl_ref, bl_ref, wd_ref, bd_ref = refs[1], refs[2], refs[3], refs[4]
        else:
            wd_ref, bd_ref = refs[1], refs[2]
            wl_ref = bl_ref = None
        o_ref, buf, sem = refs[-3], refs[-2], refs[-1]

        n = pl.program_id(0)
        t = pl.program_id(1)

        # zero only the sublane-aligned halo margins; [OFF, OFF+WP) is fully
        # overwritten by the DMA below.
        buf[0:OFF, :] = jnp.zeros((OFF, C), jnp.float32)
        buf[OFF + WP:ROWS, :] = jnp.zeros((ROWS - OFF - WP, C), jnp.float32)

        # fetch this tile's (overlapping, halo'd) input window straight from HBM.
        src = pl.multiple_of(t * TS, 8)
        cp = pltpu.make_async_copy(
            x_hbm.at[n, pl.ds(src, WP), :],
            buf.at[pl.ds(OFF, WP), :],
            sem.at[0])
        cp.start()
        cp.wait()

        if NL > 0:
            # rows outside the true sequence [0, L) must stay exactly zero so each
            # layer's ConstantPad1d semantics hold across tile / sequence edges.
            r = lax.broadcasted_iota(jnp.int32, (WP, 1), 0)
            xcoord = r + (t * TS - (p + H))
            valid = jnp.logical_and(xcoord >= 0, xcoord < L)

            for i, d in enumerate(dilations):
                x0 = buf[OFF - d:OFF - d + WP, :]
                x1 = buf[OFF:OFF + WP, :]
                x2 = buf[OFF + d:OFF + d + WP, :]
                if fuse:
                    cat = jnp.concatenate([x0, x1, x2], axis=-1)      # (WP, K*C)
                    y = jnp.dot(cat, wl_ref[i],
                                preferred_element_type=jnp.float32)
                else:
                    y = jnp.dot(x0, wl_ref[i, 0:C, :],
                                preferred_element_type=jnp.float32)
                    y = y + jnp.dot(x1, wl_ref[i, C:2 * C, :],
                                    preferred_element_type=jnp.float32)
                    y = y + jnp.dot(x2, wl_ref[i, 2 * C:3 * C, :],
                                    preferred_element_type=jnp.float32)
                y = y + bl_ref[i]
                h = _silu(y) + x1                                     # residual add
                buf[OFF:OFF + WP, :] = jnp.where(valid, h, 0.0)       # aligned store

        # strided downsample conv over the (masked) stack output.
        sels = [buf[pl.ds(OFF + H + k, T, stride=s), :] for k in range(K)]
        if fuse:
            yd = jnp.dot(jnp.concatenate(sels, axis=-1), wd_ref[...],
                         preferred_element_type=jnp.float32)
        else:
            yd = jnp.dot(sels[0], wd_ref[0:C, :],
                         preferred_element_type=jnp.float32)
            yd = yd + jnp.dot(sels[1], wd_ref[C:2 * C, :],
                              preferred_element_type=jnp.float32)
            yd = yd + jnp.dot(sels[2], wd_ref[2 * C:3 * C, :],
                              preferred_element_type=jnp.float32)
        yd = yd + bd_ref[...]
        o_ref[0] = yd.astype(o_ref.dtype)

    return kernel


def conv_stack_downsample_pallas(x_nlc, layer_ws, layer_bs, down_w, down_b, *,
                                 stride, down_pad, dilations, tile_out=64):
    N, L, C = x_nlc.shape
    K = KERNEL_SIZE
    s = stride
    p = down_pad
    dilations = tuple(dilations)
    NL = len(dilations)
    H = sum(dilations)

    L_out = (L + 2 * p - K) // s + 1
    T = min(_round_up(tile_out, 8), _round_up(L_out, 8))    # output rows per tile
    n_tiles = -(-L_out // T)
    TS = T * s

    OFF = 8                                                 # sublane-aligned offset
    WIN = (T - 1) * s + K + 2 * H                           # input rows needed / tile
    WP = _round_up(WIN, 8)
    ROWS = WP + 2 * OFF

    # pre-pad so the window for tile t starts exactly at padded row t*TS and all
    # window reads are in-bounds zeros beyond the true sequence.
    PADL = p + H
    PADR = max(0, (n_tiles - 1) * TS + WP - (L + PADL))
    xp = jnp.pad(x_nlc, ((0, 0), (PADL, PADR), (0, 0)))

    # per-tap (C_in, C_out) matrices stacked along the contraction -> (K*C, C)
    def fuse_w(w):   # w: (C_out, C_in, K) PyTorch Conv1d layout
        return jnp.transpose(w, (2, 1, 0)).reshape(K * C, C)

    wd_f = fuse_w(down_w)
    bd = down_b.reshape(1, C)

    # fuse the K taps into one deeper-contraction matmul only when the lane
    # concatenation is free (C a multiple of 128); otherwise per-tap matmuls.
    fuse = (C % 128 == 0)

    kernel = _make_block_kernel(dilations=dilations, stride=s, down_pad=p, C=C,
                                L=L, T=T, WP=WP, OFF=OFF, ROWS=ROWS, fuse=fuse)

    in_specs = [pl.BlockSpec(memory_space=pl.ANY)]
    operands = [xp]
    if NL > 0:
        wl_f = jnp.stack([fuse_w(w) for w in layer_ws])              # (NL, K*C, C)
        bl = jnp.stack(layer_bs).reshape(NL, 1, C)
        in_specs += [pl.BlockSpec((NL, K * C, C), lambda n, t: (0, 0, 0)),
                     pl.BlockSpec((NL, 1, C), lambda n, t: (0, 0, 0))]
        operands += [wl_f, bl]
    in_specs += [pl.BlockSpec((K * C, C), lambda n, t: (0, 0)),
                 pl.BlockSpec((1, C), lambda n, t: (0, 0))]
    operands += [wd_f, bd]

    cost = pl.CostEstimate(
        flops=int(2 * N * n_tiles * (NL * WP + T) * (K * C) * C),
        transcendentals=int(N * n_tiles * NL * WP * C),
        bytes_accessed=int(4 * (xp.size + (NL + 1) * (K * C * C + C)
                                + N * n_tiles * T * C)))

    out = pl.pallas_call(
        kernel,
        out_shape=jax.ShapeDtypeStruct((N, n_tiles * T, C), jnp.float32),
        grid_spec=pltpu.PrefetchScalarGridSpec(
            num_scalar_prefetch=0,
            grid=(N, n_tiles),
            in_specs=in_specs,
            out_specs=pl.BlockSpec((1, T, C), lambda n, t: (n, t, 0)),
            scratch_shapes=[pltpu.VMEM((ROWS, C), jnp.float32),
                            pltpu.SemaphoreType.DMA((1,))],
        ),
        compiler_params=pltpu.CompilerParams(
            dimension_semantics=("parallel", "parallel"),
            vmem_limit_bytes=_VMEM_LIMIT),
        cost_estimate=cost,
    )(*operands)
    return out[:, :L_out, :]


# ---------------------------------------------------------------------------
# full encoder
# ---------------------------------------------------------------------------
def seanet_encoder_pallas(x_ncl, params):
    # x_ncl: (N, 1, L).  Returns (N, L_out, dim), i.e. PyTorch's x.transpose(1, 2).
    h = input_proj_pallas(x_ncl[:, 0, :], params["in_w"], params["in_b"])
    for bi, s in enumerate(STRIDES):
        bp = params["blocks"][bi]
        h = conv_stack_downsample_pallas(h, bp["layer_ws"], bp["layer_bs"],
                                         bp["down_w"], bp["down_b"],
                                         stride=s, down_pad=1, dilations=DILATIONS)
    h = conv_stack_downsample_pallas(h, [], [], params["final_w"], params["final_b"],
                                     stride=2, down_pad=2, dilations=())
    return h


# ------------------------- parameter init (deterministic) ------------------
def init_params(key, dim):
    # weight_norm(dim=0) with g initialized to ||v|| is the identity at init, so the
    # effective weights equal the raw tensors below (used identically by the reference).
    C, K = dim, KERNEL_SIZE

    def conv_init(k, c_out, c_in):
        kw, kb = jax.random.split(k)
        scale = 1.0 / (c_in * K) ** 0.5
        w = jax.random.uniform(kw, (c_out, c_in, K), jnp.float32, -scale, scale)
        b = jax.random.uniform(kb, (c_out,), jnp.float32, -scale, scale)
        return w, b

    keys = jax.random.split(key, 6)
    in_w, in_b = conv_init(keys[0], C, 1)
    blocks = []
    for bi in range(4):
        bk = jax.random.split(keys[1 + bi], 4)
        lws, lbs = [], []
        for i in range(3):
            w, b = conv_init(bk[i], C, C)
            lws.append(w)
            lbs.append(b)
        dw, db = conv_init(bk[3], C, C)
        blocks.append({"layer_ws": lws, "layer_bs": lbs, "down_w": dw, "down_b": db})
    final_w, final_b = conv_init(keys[5], C, C)
    return {"in_w": in_w, "in_b": in_b, "blocks": blocks,
            "final_w": final_w, "final_b": final_b}


# ------------------------- pure-JAX reference (XLA convs) -------------------
def reference_forward(x_ncl, params):
    dn = ("NCH", "OIH", "NCH")
    h = lax.conv_general_dilated(x_ncl, params["in_w"], (1,), [(1, 1)],
                                 dimension_numbers=dn)
    h = h + params["in_b"][None, :, None]
    for bi, s in enumerate(STRIDES):
        bp = params["blocks"][bi]
        for i, d in enumerate(DILATIONS):
            res = h
            y = lax.conv_general_dilated(h, bp["layer_ws"][i], (1,), [(d, d)],
                                         rhs_dilation=(d,), dimension_numbers=dn)
            y = y + bp["layer_bs"][i][None, :, None]
            h = jax.nn.silu(y) + res
        h = lax.conv_general_dilated(h, bp["down_w"], (s,), [(1, 1)],
                                     dimension_numbers=dn)
        h = h + bp["down_b"][None, :, None]
    h = lax.conv_general_dilated(h, params["final_w"], (2,), [(2, 2)],
                                 dimension_numbers=dn)
    h = h + params["final_b"][None, :, None]
    return jnp.transpose(h, (0, 2, 1))


if __name__ == "__main__":
    N, DIM, L = 2, 32, 1920            # total downsampling 4*5*6*8*2 = 1920
    key = jax.random.PRNGKey(0)
    kx, kp = jax.random.split(key)
    x = jax.random.normal(kx, (N, 1, L), jnp.float32)
    params = init_params(kp, DIM)

    out = seanet_encoder_pallas(x, params)
    out = jax.block_until_ready(out)

    ref = reference_forward(x, params)
    assert out.shape == ref.shape, (out.shape, ref.shape)
    if not jnp.allclose(out, ref, atol=2e-2, rtol=2e-2):
        max_err = float(jnp.max(jnp.abs(out - ref)))
        raise AssertionError(f"mismatch vs reference, max abs err = {max_err}")
    print("KERNEL_OK")
</pallas_src>

<mosaic_0001>
module attributes {stable_mosaic.version = 11 : i64} {
  func.func @_input_proj_kernel(%arg0: i32, %arg1: i32, %arg2: memref<1x3x512xf32, #tpu.memory_space<vmem>>, %arg3: memref<3x32xf32, #tpu.memory_space<vmem>>, %arg4: memref<1x32xf32, #tpu.memory_space<vmem>>, %arg5: memref<1x512x32xf32, #tpu.memory_space<vmem>>) attributes {dimension_semantics = [#tpu.dimension_semantics<parallel>, #tpu.dimension_semantics<parallel>], iteration_bounds = array<i64: 2, 4>, scalar_prefetch = 0 : i64, scratch_operands = 0 : i64, tpu.core_type = #tpu.core_type<tc>, window_params = [{transform_indices = @transform_0, window_bounds = array<i64: 1, 3, 512>}, {pipeline_mode = #tpu.pipeline_mode<synchronous>, transform_indices = @transform_1, window_bounds = array<i64: 3, 32>}, {pipeline_mode = #tpu.pipeline_mode<synchronous>, transform_indices = @transform_2, window_bounds = array<i64: 1, 32>}, {transform_indices = @transform_3, window_bounds = array<i64: 1, 512, 32>}]} {
    %c0 = arith.constant 0 : index
    %c0_0 = arith.constant 0 : index
    %c0_1 = arith.constant 0 : index
    %0 = vector.load %arg2[%c0, %c0_0, %c0_1] : memref<1x3x512xf32, #tpu.memory_space<vmem>>, vector<1x3x512xf32>
    %1 = vector.shape_cast %0 : vector<1x3x512xf32> to vector<3x512xf32>
    %c0_2 = arith.constant 0 : index
    %c0_3 = arith.constant 0 : index
    %2 = vector.load %arg3[%c0_2, %c0_3] : memref<3x32xf32, #tpu.memory_space<vmem>>, vector<3x32xf32>
    %cst = arith.constant dense<0.000000e+00> : vector<512x32xf32>
    %3 = tpu.matmul %1, %2, %cst {dimension_numbers = #tpu.dot_dimension_numbers<[0], [0], [1], [1], [0, 1, 1, 1], [], []>} : vector<3x512xf32>, vector<3x32xf32>, vector<512x32xf32> -> vector<512x32xf32>
    %c0_4 = arith.constant 0 : index
    %c0_5 = arith.constant 0 : index
    %4 = vector.load %arg4[%c0_4, %c0_5] : memref<1x32xf32, #tpu.memory_space<vmem>>, vector<1x32xf32>
    %5 = vector.broadcast %4 : vector<1x32xf32> to vector<512x32xf32>
    %6 = arith.addf %3, %5 : vector<512x32xf32>
    %c0_6 = arith.constant 0 : index
    %c0_7 = arith.constant 0 : index
    %c0_8 = arith.constant 0 : index
    %7 = vector.load %arg5[%c0_6, %c0_7, %c0_8] : memref<1x512x32xf32, #tpu.memory_space<vmem>>, vector<1x512x32xf32>
    %8 = vector.shape_cast %7 : vector<1x512x32xf32> to vector<512x32xf32>
    %9 = vector.shape_cast %6 : vector<512x32xf32> to vector<1x512x32xf32>
    tpu.vector_store %arg5[%c0_6, %c0_7, %c0_8], %9 {strides = array<i32>} : memref<1x512x32xf32, #tpu.memory_space<vmem>>, vector<1x512x32xf32>,
    return
  }
  func.func @transform_0(%arg0: i32, %arg1: i32) -> (i32, i32, i32) {
    %c0_i32 = arith.constant 0 : i32
    %c0_i32_0 = arith.constant 0 : i32
    return %arg0, %c0_i32, %arg1 : i32, i32, i32
  }
  func.func @transform_1(%arg0: i32, %arg1: i32) -> (i32, i32) {
    %c0_i32 = arith.constant 0 : i32
    %c0_i32_0 = arith.constant 0 : i32
    %c0_i32_1 = arith.constant 0 : i32
    return %c0_i32, %c0_i32_0 : i32, i32
  }
  func.func @transform_2(%arg0: i32, %arg1: i32) -> (i32, i32) {
    %c0_i32 = arith.constant 0 : i32
    %c0_i32_0 = arith.constant 0 : i32
    %c0_i32_1 = arith.constant 0 : i32
    return %c0_i32, %c0_i32_0 : i32, i32
  }
  func.func @transform_3(%arg0: i32, %arg1: i32) -> (i32, i32, i32) {
    %c0_i32 = arith.constant 0 : i32
    %c0_i32_0 = arith.constant 0 : i32
    return %arg0, %arg1, %c0_i32 : i32, i32, i32
  }
}

</mosaic_0001>

<llo_original>
// kernel: tpu_custom_call.1
$region0: #{tpu_custom_call.1}
  #allocation0 [shape = 'u32[]', space=smem, size = 0x4, offset = 0x4, fixed_abs, tag = 'smem constant byte address 0x4 - core index']
  #allocation1 [shape = 'u32[144,128]{1,0:T(1,128)}', space=vmem, size = 0x12000, scoped, tag = 'internal scratch']
  %s0 = inlined_call_operand.vmem [shape: f32[2,3,2048], index: 0, kind: input, shape index: {}]
  %s1 = inlined_call_operand.hbm [shape: f32[3,32], index: 1, kind: input, shape index: {}]
  %s2 = inlined_call_operand.hbm [shape: f32[1,32], index: 2, kind: input, shape index: {}]
  %s3 = inlined_call_operand.vmem [shape: f32[2,2048,32], index: 3, kind: output, shape index: {}]
  %s4 = sld [smem:[#allocation0]]
  $region53: #{tpu_custom_call.1} parent=0
    _
  %s6 = ssub.s32 1, %s4
  %s7 = scalar_select 0, %s6, %s4
  $region1: #{tpu_custom_call.1} parent=0
    #allocation2 [shape = 'u8[2048]{0}', space=vmem, size = 0x800, scoped, tag = 'input window, operand 1, single buffered']
    #allocation3 [shape = 's32[2]{0}', space=sflag, size = 0x8, scoped, tag = 'scoped memory for tpu_custom_call.1']
    #allocation4 [shape = 'u8[512]{0}', space=vmem, size = 0x400, scoped, tag = 'input window, operand 2, single buffered']
    #allocation5 [shape = 's32[1]{0}', space=sflag, size = 0x4, scoped, tag = 'scoped memory for tpu_custom_call.1']
    %8 = vsyncpa [#allocation3], 0
    %9 = vsyncpa [#allocation5], 0
    loop: start=0, step=1, limit=10
    $region2: #{tpu_custom_call.1} parent=1 // loop_pre_header
      _
    $region3: #{tpu_custom_call.1} parent=1 // loop_header
      %s11 = sphi 0, %s15
      %p12 = scmp.ge.s32.totalorder %s11, 10
      %s18 = sphi 0, %s30
      %s19 = sphi 0, %s26
      %s20 = sphi 0, %s18
      %s21 = sphi 0, %s19
      %s22 = sphi 0, %s20
      %s23 = sphi 0, %s21
      %s35 = sphi 0, %s37
      %s38 = sphi 0, %s35
      %s39 = sphi 0, %s38
      %s55 = sphi 0, %s39
      %s59 = sphi 0, %s59
      %s61 = sphi 0, %s59
      %s62 = sphi 0, %s61
      %s76 = sphi 0, %s62
      %s80 = sphi 0, %s80
      %s82 = sphi 0, %s80
      %s83 = sphi 0, %s82
      %s97 = sphi 0, %s83
      %s105 = sphi 0, %s107
      %s108 = sphi 0, %s105
      %s109 = sphi 0, %s108
      %s125 = sphi 0, %s109
    $region4: #{tpu_custom_call.1} parent=1 // loop_header_branch
      %14 = sbr.rel (%p12) target = $region8
    $region5: #{tpu_custom_call.1} parent=1 // loop_body
      %s16 = ssub.s32 %s11, 1
      %s17 = ssub.s32 %s11, 2
      %s24 = sadd.s32 1, %s19
      %p25 = scmp.ge.s32.totalorder %s24, 4
      %s26 = scalar_select %p25, 0, %s24
      %s27 = sadd.s32 1, %s18
      %s28 = scalar_select %p25, %s27, %s18
      %p29 = scmp.ge.s32.totalorder %s28, 2
      %s30 = scalar_select %p29, 0, %s28
      %s31 = ssub.s32 %s18, %s30
      %s32 = ssub.s32 %s19, %s26
      %s33 = sor.u32 %s31, %s32
      %p34 = scmp.eq.s32.totalorder %s33, 0
      %s36 = sadd.s32 %s35, 1
      %s37 = scalar_select %p34, %s35, %s36
      %p40 = pneg %p34
      %p41 = scmp.eq.s32.totalorder %s11, 7
      %p42 = por %p40, %p41
      %p43 = scmp.ne.s32.totalorder %s35, %s38
      %p44 = scmp.eq.s32.totalorder %s11, 0
      %p45 = por %p43, %p44
      %p46 = scmp.ne.s32.totalorder %s35, %s38
      %p47 = scmp.eq.s32.totalorder %s16, 7
      %p48 = por %p46, %p47
      %p49 = scmp.ne.s32.totalorder %s38, %s39
      %p50 = scmp.eq.s32.totalorder %s16, 0
      %p51 = por %p49, %p50
      %p52 = scmp.ne.s32.totalorder %s38, %s39
      %p53 = scmp.eq.s32.totalorder %s17, 7
      %p54 = por %p52, %p53
      %p56 = scmp.ne.s32.totalorder %s39, %s55
      %p57 = scmp.eq.s32.totalorder %s17, 0
      %p58 = por %p56, %p57
      %s60 = sadd.s32 %s59, 1
      %p63 = scmp.eq.s32.totalorder %s11, 7
      %p64 = scmp.ne.s32.totalorder %s59, %s61
      %p65 = scmp.eq.s32.totalorder %s11, 0
      %p66 = por %p64, %p65
      %p67 = scmp.ne.s32.totalorder %s59, %s61
      %p68 = scmp.eq.s32.totalorder %s16, 7
      %p69 = por %p67, %p68
      %p70 = scmp.ne.s32.totalorder %s61, %s62
      %p71 = scmp.eq.s32.totalorder %s16, 0
      %p72 = por %p70, %p71
      %p73 = scmp.ne.s32.totalorder %s61, %s62
      %p74 = scmp.eq.s32.totalorder %s17, 7
      %p75 = por %p73, %p74
      %p77 = scmp.ne.s32.totalorder %s62, %s76
      %p78 = scmp.eq.s32.totalorder %s17, 0
      %p79 = por %p77, %p78
      %s81 = sadd.s32 %s80, 1
      %p84 = scmp.eq.s32.totalorder %s11, 7
      %p85 = scmp.ne.s32.totalorder %s80, %s82
      %p86 = scmp.eq.s32.totalorder %s11, 0
      %p87 = por %p85, %p86
      %p88 = scmp.ne.s32.totalorder %s80, %s82
      %p89 = scmp.eq.s32.totalorder %s16, 7
      %p90 = por %p88, %p89
      %p91 = scmp.ne.s32.totalorder %s82, %s83
      %p92 = scmp.eq.s32.totalorder %s16, 0
      %p93 = por %p91, %p92
      %p94 = scmp.ne.s32.totalorder %s82, %s83
      %p95 = scmp.eq.s32.totalorder %s17, 7
      %p96 = por %p94, %p95
      %p98 = scmp.ne.s32.totalorder %s83, %s97
      %p99 = scmp.eq.s32.totalorder %s17, 0
      %p100 = por %p98, %p99
      %s101 = ssub.s32 %s18, %s30
      %s102 = ssub.s32 %s19, %s26
      %s103 = sor.u32 %s101, %s102
      %p104 = scmp.eq.s32.totalorder %s103, 0
      %s106 = sadd.s32 %s105, 1
      %s107 = scalar_select %p104, %s105, %s106
      %p110 = pneg %p104
      %p111 = scmp.eq.s32.totalorder %s11, 7
      %p112 = por %p110, %p111
      %p113 = scmp.ne.s32.totalorder %s105, %s108
      %p114 = scmp.eq.s32.totalorder %s11, 0
      %p115 = por %p113, %p114
      %p116 = scmp.ne.s32.totalorder %s105, %s108
      %p117 = scmp.eq.s32.totalorder %s16, 7
      %p118 = por %p116, %p117
      %p119 = scmp.ne.s32.totalorder %s108, %s109
      %p120 = scmp.eq.s32.totalorder %s16, 0
      %p121 = por %p119, %p120
      %p122 = scmp.ne.s32.totalorder %s108, %s109
      %p123 = scmp.eq.s32.totalorder %s17, 7
      %p124 = por %p122, %p123
      %p126 = scmp.ne.s32.totalorder %s109, %s125
      %p127 = scmp.eq.s32.totalorder %s17, 0
      %p128 = por %p126, %p127
      %p129 = scmp.le.s32.totalorder 1, %s11
      %p130 = scmp.lt.s32.totalorder %s11, 9
      %p131 = pnand %p129, %p130
      %p132 = pneg %p131
      // Predicated region
      $region9: #{tpu_custom_call.1} parent=5 // pred_check
        _
      $region10: #{tpu_custom_call.1} parent=5 // pred_check_branch
        %134 = sbr.rel (%p131) target = $region12
      $region11: #{tpu_custom_call.1} parent=5 // pred_region
        %s135 = ssub.s32 %s11, 1
        // Predicated region
        $region13: #{tpu_custom_call.1} parent=11 // pred_check
          %p136 = pneg %p72
        $region14: #{tpu_custom_call.1} parent=11 // pred_check_branch
          %138 = sbr.rel (%p136) target = $region16
        $region15: #{tpu_custom_call.1} parent=11 // pred_region
          %s140 = ssub.s32 64, 64
          %141 = vsyncadd [#allocation3], %s140
          %s143 = sshll.u32 [#allocation2], 4
          %s144 = int_to_ptr.vmem [resolvable:$true] %s143
          %146 = dma.hbm_to_vmem [thread:$0]  %s1, 64, %s144, [#allocation3]
        $region16: #{tpu_custom_call.1} parent=11 // pred_fallthru
          _
        // Predicated region
        $region17: #{tpu_custom_call.1} parent=11 // pred_check
          %p147 = pneg %p93
        $region18: #{tpu_custom_call.1} parent=11 // pred_check_branch
          %149 = sbr.rel (%p147) target = $region20
        $region19: #{tpu_custom_call.1} parent=11 // pred_region
          %s151 = ssub.s32 16, 16
          %152 = vsyncadd [#allocation5], %s151
          %s154 = sshll.u32 [#allocation4], 4
          %s155 = int_to_ptr.vmem [resolvable:$true] %s154
          %157 = dma.hbm_to_vmem [thread:$0]  %s2, 16, %s155, [#allocation5]
        $region20: #{tpu_custom_call.1} parent=11 // pred_fallthru
          _
      $region12: #{tpu_custom_call.1} parent=5 // pred_fallthru
        _
      %p158 = scmp.lt.s32.totalorder %s11, 8
      // Predicated region
      $region21: #{tpu_custom_call.1} parent=5 // pred_check
        %p159 = pneg %p158
      $region22: #{tpu_custom_call.1} parent=5 // pred_check_branch
        %161 = sbr.rel (%p159) target = $region24
      $region23: #{tpu_custom_call.1} parent=5 // pred_region
        // Predicated region
        $region25: #{tpu_custom_call.1} parent=23 // pred_check
          %p162 = pneg %p45
        $region26: #{tpu_custom_call.1} parent=23 // pred_check_branch
          %164 = sbr.rel (%p162) target = $region28
        $region27: #{tpu_custom_call.1} parent=23 // pred_region
          %s165 = smul.u32 4, %s19
          %p166 = scmp.lt.s32.totalorder %s18, 1
          %s167 = scalar_select %p166, %s18, 1
          %p168 = scmp.lt.s32.totalorder %s165, 15
          %s169 = scalar_select %p168, %s165, 15
          %s170 = smul.addr %s167, 16
          %s171 = sadd.s32 %s169, %s170
          %s172 = smul.addr %s171, 4
          %s173 = scalar_lea.vmem %s0, %s172
          %s174 = smul.u32 4, %s19
        $region28: #{tpu_custom_call.1} parent=23 // pred_fallthru
          _
      $region24: #{tpu_custom_call.1} parent=5 // pred_fallthru
        _
      %p175 = scmp.le.s32.totalorder 1, %s11
      %p176 = scmp.lt.s32.totalorder %s11, 9
      %p177 = pnand %p175, %p176
      %p178 = pneg %p177
      // Predicated region
      $region29: #{tpu_custom_call.1} parent=5 // pred_check
        _
      $region30: #{tpu_custom_call.1} parent=5 // pred_check_branch
        %180 = sbr.rel (%p177) target = $region32
      $region31: #{tpu_custom_call.1} parent=5 // pred_region
        %s181 = ssub.s32 %s11, 1
        // Predicated region
        $region33: #{tpu_custom_call.1} parent=31 // pred_check
          %p182 = pneg %p72
        $region34: #{tpu_custom_call.1} parent=31 // pred_check_branch
          %184 = sbr.rel (%p182) target = $region36
        $region35: #{tpu_custom_call.1} parent=31 // pred_region
          %185 = dma.done [#allocation3], 64
        $region36: #{tpu_custom_call.1} parent=31 // pred_fallthru
          _
        // Predicated region
        $region37: #{tpu_custom_call.1} parent=31 // pred_check
          %p186 = pneg %p93
        $region38: #{tpu_custom_call.1} parent=31 // pred_check_branch
          %188 = sbr.rel (%p186) target = $region40
        $region39: #{tpu_custom_call.1} parent=31 // pred_region
          %189 = dma.done [#allocation5], 16
        $region40: #{tpu_custom_call.1} parent=31 // pred_fallthru
          _
        %s190 = smul.u32 4, %s21
        %p191 = scmp.lt.s32.totalorder %s20, 1
        %s192 = scalar_select %p191, %s20, 1
        %p193 = scmp.lt.s32.totalorder %s190, 15
        %s194 = scalar_select %p193, %s190, 15
        %s195 = smul.addr %s192, 16
        %s196 = sadd.s32 %s194, %s195
        %s197 = smul.addr %s196, 4
        %s198 = scalar_lea.vmem %s0, %s197
        %p199 = pneg %p51
        %p200 = pneg %p48
        %p201 = pneg %p72
        %p202 = pneg %p69
        %p203 = pneg %p93
        %p204 = pneg %p90
        %p205 = pneg %p121
        %p206 = pneg %p118
        %s207 = smul.u32 64, %s21
        %p208 = scmp.lt.s32.totalorder %s20, 1
        %s209 = scalar_select %p208, %s20, 1
        %p210 = scmp.lt.s32.totalorder %s207, 255
        %s211 = scalar_select %p210, %s207, 255
        %s212 = smul.addr %s209, 256
        %s213 = sadd.s32 %s211, %s212
        %s214 = smul.addr %s213, 8
        %s215 = scalar_lea.vmem %s3, %s214
        %s216 = smul.u32 4, %s21
        %p217 = scmp.lt.s32.totalorder %s20, 1
        %s218 = scalar_select %p217, %s20, 1
        %p219 = scmp.lt.s32.totalorder %s216, 15
        %s220 = scalar_select %p219, %s216, 15
        %s221 = smul.addr %s218, 16
        %s222 = sadd.s32 %s220, %s221
        %s223 = smul.addr %s222, 4
        %s224 = scalar_lea.vmem %s0, %s223
        %s225 = smul.u32 4, %s21
        %s226 = smul.u32 64, %s21
        %p227 = scmp.lt.s32.totalorder %s20, 1
        %s228 = scalar_select %p227, %s20, 1
        %p229 = scmp.lt.s32.totalorder %s226, 255
        %s230 = scalar_select %p229, %s226, 255
        %s231 = smul.addr %s228, 256
        %s232 = sadd.s32 %s230, %s231
        %s233 = smul.addr %s232, 8
        %s234 = scalar_lea.vmem %s3, %s233
        %s235 = smul.u32 64, %s21
        %v236 = vld [vmem:[%s224] sm:$0x77]
        %v237 = vld [vmem:[%s224 + $0x8] sm:$0x77]
        %v238 = vld [vmem:[#allocation2] sm:$0x7]
        %v239 = vld [vmem:[#allocation4] sm:$0x1]
        %v241 = vlaneseq
        %v242 = vshrl.u32 %v241, 7
        %v243 = vsub.s32 0, %v242
        %v244 = vrot.slane %v239, %v243
        %v248 = vcombine.high %v236, %v236
        %v249 = vcombine.high %v237, %v237
        %252 = vxpose.xlu0.b32.start [1/16] %v236, 128
        %253 = vxpose.xlu0.b32.cont [2/16] 0.0, 128
        %254 = vxpose.xlu0.b32.cont [3/16] 0.0, 128
        %255 = vxpose.xlu0.b32.cont [4/16] 0.0, 128
        %256 = vxpose.xlu0.b32.cont [5/16] 0.0, 128
        %257 = vxpose.xlu0.b32.cont [6/16] 0.0, 128
        %258 = vxpose.xlu0.b32.cont [7/16] 0.0, 128
        %259 = vxpose.xlu0.b32.cont [8/16] 0.0, 128
        %260 = vxpose.xlu0.b32.cont [9/16] 0.0, 128
        %261 = vxpose.xlu0.b32.cont [10/16] 0.0, 128
        %262 = vxpose.xlu0.b32.cont [11/16] 0.0, 128
        %263 = vxpose.xlu0.b32.cont [12/16] 0.0, 128
        %264 = vxpose.xlu0.b32.cont [13/16] 0.0, 128
        %265 = vxpose.xlu0.b32.cont [14/16] 0.0, 128
        %266 = vxpose.xlu0.b32.cont [15/16] 0.0, 128
        %267 = vxpose.xlu0.b32.end [16/16] 0.0, 128
        %v268 = vpop.trf.xlu0
        %v269 = vpop.trf.xlu0
        %v270 = vpop.trf.xlu0
        %v271 = vpop.trf.xlu0
        %v272 = vpop.trf.xlu0
        %v273 = vpop.trf.xlu0
        %v274 = vpop.trf.xlu0
        %v275 = vpop.trf.xlu0
        %v276 = vpop.trf.xlu0
        %v277 = vpop.trf.xlu0
        %v278 = vpop.trf.xlu0
        %v279 = vpop.trf.xlu0
        %v280 = vpop.trf.xlu0
        %v281 = vpop.trf.xlu0
        %v282 = vpop.trf.xlu0
        %v283 = vpop.trf.xlu0
        %284 = vxpose.xlu0.b32.start [1/16] %v248, 128
        %285 = vxpose.xlu0.b32.cont [2/16] 0.0, 128
        %286 = vxpose.xlu0.b32.cont [3/16] 0.0, 128
        %287 = vxpose.xlu0.b32.cont [4/16] 0.0, 128
        %288 = vxpose.xlu0.b32.cont [5/16] 0.0, 128
        %289 = vxpose.xlu0.b32.cont [6/16] 0.0, 128
        %290 = vxpose.xlu0.b32.cont [7/16] 0.0, 128
        %291 = vxpose.xlu0.b32.cont [8/16] 0.0, 128
        %292 = vxpose.xlu0.b32.cont [9/16] 0.0, 128
        %293 = vxpose.xlu0.b32.cont [10/16] 0.0, 128
        %294 = vxpose.xlu0.b32.cont [11/16] 0.0, 128
        %295 = vxpose.xlu0.b32.cont [12/16] 0.0, 128
        %296 = vxpose.xlu0.b32.cont [13/16] 0.0, 128
        %297 = vxpose.xlu0.b32.cont [14/16] 0.0, 128
        %298 = vxpose.xlu0.b32.cont [15/16] 0.0, 128
        %299 = vxpose.xlu0.b32.end [16/16] 0.0, 128
        %v300 = vpop.trf.xlu0
        %v301 = vpop.trf.xlu0
        %v302 = vpop.trf.xlu0
        %v303 = vpop.trf.xlu0
        %v304 = vpop.trf.xlu0
        %v305 = vpop.trf.xlu0
        %v306 = vpop.trf.xlu0
        %v307 = vpop.trf.xlu0
        %v308 = vpop.trf.xlu0
        %v309 = vpop.trf.xlu0
        %v310 = vpop.trf.xlu0
        %v311 = vpop.trf.xlu0
        %v312 = vpop.trf.xlu0
        %v313 = vpop.trf.xlu0
        %v314 = vpop.trf.xlu0
        %v315 = vpop.trf.xlu0
        %316 = vxpose.xlu0.b32.start [1/16] %v237, 128
        %317 = vxpose.xlu0.b32.cont [2/16] 0.0, 128
        %318 = vxpose.xlu0.b32.cont [3/16] 0.0, 128
        %319 = vxpose.xlu0.b32.cont [4/16] 0.0, 128
        %320 = vxpose.xlu0.b32.cont [5/16] 0.0, 128
        %321 = vxpose.xlu0.b32.cont [6/16] 0.0, 128
        %322 = vxpose.xlu0.b32.cont [7/16] 0.0, 128
        %323 = vxpose.xlu0.b32.cont [8/16] 0.0, 128
        %324 = vxpose.xlu0.b32.cont [9/16] 0.0, 128
        %325 = vxpose.xlu0.b32.cont [10/16] 0.0, 128
        %326 = vxpose.xlu0.b32.cont [11/16] 0.0, 128
        %327 = vxpose.xlu0.b32.cont [12/16] 0.0, 128
        %328 = vxpose.xlu0.b32.cont [13/16] 0.0, 128
        %329 = vxpose.xlu0.b32.cont [14/16] 0.0, 128
        %330 = vxpose.xlu0.b32.cont [15/16] 0.0, 128
        %331 = vxpose.xlu0.b32.end [16/16] 0.0, 128
        %v332 = vpop.trf.xlu0
        %v333 = vpop.trf.xlu0
        %v334 = vpop.trf.xlu0
        %v335 = vpop.trf.xlu0
        %v336 = vpop.trf.xlu0
        %v337 = vpop.trf.xlu0
        %v338 = vpop.trf.xlu0
        %v339 = vpop.trf.xlu0
        %v340 = vpop.trf.xlu0
        %v341 = vpop.trf.xlu0
        %v342 = vpop.trf.xlu0
        %v343 = vpop.trf.xlu0
        %v344 = vpop.trf.xlu0
        %v345 = vpop.trf.xlu0
        %v346 = vpop.trf.xlu0
        %v347 = vpop.trf.xlu0
        %348 = vxpose.xlu0.b32.start [1/16] %v249, 128
        %349 = vxpose.xlu0.b32.cont [2/16] 0.0, 128
        %350 = vxpose.xlu0.b32.cont [3/16] 0.0, 128
        %351 = vxpose.xlu0.b32.cont [4/16] 0.0, 128
        %352 = vxpose.xlu0.b32.cont [5/16] 0.0, 128
        %353 = vxpose.xlu0.b32.cont [6/16] 0.0, 128
        %354 = vxpose.xlu0.b32.cont [7/16] 0.0, 128
        %355 = vxpose.xlu0.b32.cont [8/16] 0.0, 128
        %356 = vxpose.xlu0.b32.cont [9/16] 0.0, 128
        %357 = vxpose.xlu0.b32.cont [10/16] 0.0, 128
        %358 = vxpose.xlu0.b32.cont [11/16] 0.0, 128
        %359 = vxpose.xlu0.b32.cont [12/16] 0.0, 128
        %360 = vxpose.xlu0.b32.cont [13/16] 0.0, 128
        %361 = vxpose.xlu0.b32.cont [14/16] 0.0, 128
        %362 = vxpose.xlu0.b32.cont [15/16] 0.0, 128
        %363 = vxpose.xlu0.b32.end [16/16] 0.0, 128
        %v364 = vpop.trf.xlu0
        %v365 = vpop.trf.xlu0
        %v366 = vpop.trf.xlu0
        %v367 = vpop.trf.xlu0
        %v368 = vpop.trf.xlu0
        %v369 = vpop.trf.xlu0
        %v370 = vpop.trf.xlu0
        %v371 = vpop.trf.xlu0
        %v372 = vpop.trf.xlu0
        %v373 = vpop.trf.xlu0
        %v374 = vpop.trf.xlu0
        %v375 = vpop.trf.xlu0
        %v376 = vpop.trf.xlu0
        %v377 = vpop.trf.xlu0
        %v378 = vpop.trf.xlu0
        %v379 = vpop.trf.xlu0
        %vm380 = vcmask 23552
        %v382 = vsel %vm380, %v268, 0
        %v385 = vsel %vm380, %v269, 0
        %v388 = vsel %vm380, %v270, 0
        %v391 = vsel %vm380, %v271, 0
        %v394 = vsel %vm380, %v272, 0
        %v397 = vsel %vm380, %v273, 0
        %v400 = vsel %vm380, %v274, 0
        %v403 = vsel %vm380, %v275, 0
        %v406 = vsel %vm380, %v276, 0
        %v409 = vsel %vm380, %v277, 0
        %v412 = vsel %vm380, %v278, 0
        %v415 = vsel %vm380, %v279, 0
        %v418 = vsel %vm380, %v280, 0
        %v421 = vsel %vm380, %v281, 0
        %v424 = vsel %vm380, %v282, 0
        %v427 = vsel %vm380, %v283, 0
        %v430 = vsel %vm380, %v300, 0
        %v433 = vsel %vm380, %v301, 0
        %v436 = vsel %vm380, %v302, 0
        %v439 = vsel %vm380, %v303, 0
        %v442 = vsel %vm380, %v304, 0
        %v445 = vsel %vm380, %v305, 0
        %v448 = vsel %vm380, %v306, 0
        %v451 = vsel %vm380, %v307, 0
        %v454 = vsel %vm380, %v308, 0
        %v457 = vsel %vm380, %v309, 0
        %v460 = vsel %vm380, %v310, 0
        %v463 = vsel %vm380, %v311, 0
        %v466 = vsel %vm380, %v312, 0
        %v469 = vsel %vm380, %v313, 0
        %v472 = vsel %vm380, %v314, 0
        %v475 = vsel %vm380, %v315, 0
        %v478 = vsel %vm380, %v332, 0
        %v481 = vsel %vm380, %v333, 0
        %v484 = vsel %vm380, %v334, 0
        %v487 = vsel %vm380, %v335, 0
        %v490 = vsel %vm380, %v336, 0
        %v493 = vsel %vm380, %v337, 0
        %v496 = vsel %vm380, %v338, 0
        %v499 = vsel %vm380, %v339, 0
        %v502 = vsel %vm380, %v340, 0
        %v505 = vsel %vm380, %v341, 0
        %v508 = vsel %vm380, %v342, 0
        %v511 = vsel %vm380, %v343, 0
        %v514 = vsel %vm380, %v344, 0
        %v517 = vsel %vm380, %v345, 0
        %v520 = vsel %vm380, %v346, 0
        %v523 = vsel %vm380, %v347, 0
        %v526 = vsel %vm380, %v364, 0
        %v529 = vsel %vm380, %v365, 0
        %v532 = vsel %vm380, %v366, 0
        %v535 = vsel %vm380, %v367, 0
        %v538 = vsel %vm380, %v368, 0
        %v541 = vsel %vm380, %v369, 0
        %v544 = vsel %vm380, %v370, 0
        %v547 = vsel %vm380, %v371, 0
        %v550 = vsel %vm380, %v372, 0
        %v553 = vsel %vm380, %v373, 0
        %v556 = vsel %vm380, %v374, 0
        %v559 = vsel %vm380, %v375, 0
        %v562 = vsel %vm380, %v376, 0
        %v565 = vsel %vm380, %v377, 0
        %v568 = vsel %vm380, %v378, 0
        %v571 = vsel %vm380, %v379, 0
        %vm573 = vcmask 1042432
        %v575 = vsel %vm573, %v238, 0
        %577 = vmatprep.subr.mxu0 0.0
        %578 = vmatpush1.msra.mxu0 0.0
        %579 = vmatprep.subr.mxu0 0.0
        %580 = vmatpush1.msra.mxu0 0.0
        %581 = vmatprep.subr.mxu0 0.0
        %582 = vmatpush1.msra.mxu0 0.0
        %583 = vmatprep.subr.mxu0 0.0
        %584 = vmatpush1.msra.mxu0 0.0
        %585 = vmatprep.subr.mxu0 0.0
        %586 = vmatpush1.msra.mxu0 0.0
        %587 = vmatprep.subr.mxu0 0.0
        %588 = vmatpush1.msra.mxu0 0.0
        %589 = vmatprep.subr.mxu0 0.0
        %590 = vmatpush1.msra.mxu0 0.0
        %591 = vmatprep.subr.mxu0 0.0
        %592 = vmatpush1.msra.mxu0 0.0
        %593 = vmatprep.subr.mxu0 0.0
        %594 = vmatpush1.msra.mxu0 0.0
        %595 = vmatprep.subr.mxu0 0.0
        %596 = vmatpush1.msra.mxu0 0.0
        %597 = vmatprep.subr.mxu0 0.0
        %598 = vmatpush1.msra.mxu0 0.0
        %599 = vmatprep.subr.mxu0 0.0
        %600 = vmatpush1.msra.mxu0 0.0
        %601 = vmatprep.subr.mxu0 0.0
        %602 = vmatpush1.msra.mxu0 0.0
        %603 = vmatprep.subr.mxu0 0.0
        %604 = vmatpush1.msra.mxu0 0.0
        %605 = vmatprep.subr.mxu0 0.0
        %606 = vmatpush1.msra.mxu0 0.0
        %607 = vmatprep.subr.mxu0 0.0
        %608 = vmatpush1.msra.mxu0 %v575
        %609 = vmatprep.subr.mxu0 0.0
        %610 = vmatpush2.msra.mxu0 0.0
        %611 = vmatprep.subr.mxu0 0.0
        %612 = vmatpush2.msra.mxu0 0.0
        %613 = vmatprep.subr.mxu0 0.0
        %614 = vmatpush2.msra.mxu0 0.0
        %615 = vmatprep.subr.mxu0 0.0
        %616 = vmatpush2.msra.mxu0 0.0
        %617 = vmatprep.subr.mxu0 0.0
        %618 = vmatpush2.msra.mxu0 0.0
        %619 = vmatprep.subr.mxu0 0.0
        %620 = vmatpush2.msra.mxu0 0.0
        %621 = vmatprep.subr.mxu0 0.0
        %622 = vmatpush2.msra.mxu0 0.0
        %623 = vmatprep.subr.mxu0 0.0
        %624 = vmatpush2.msra.mxu0 0.0
        %625 = vmatprep.subr.mxu0 0.0
        %626 = vmatpush2.msra.mxu0 0.0
        %627 = vmatprep.subr.mxu0 0.0
        %628 = vmatpush2.msra.mxu0 0.0
        %629 = vmatprep.subr.mxu0 0.0
        %630 = vmatpush2.msra.mxu0 0.0
        %631 = vmatprep.subr.mxu0 0.0
        %632 = vmatpush2.msra.mxu0 0.0
        %633 = vmatprep.subr.mxu0 0.0
        %634 = vmatpush2.msra.mxu0 0.0
        %635 = vmatprep.subr.mxu0 0.0
        %636 = vmatpush2.msra.mxu0 0.0
        %637 = vmatprep.subr.mxu0 0.0
        %638 = vmatpush2.msra.mxu0 0.0
        %639 = vmatprep.subr.mxu0 0.0
        %640 = vmatpush2.msra.mxu0 0.0
        %641 = vmatprep.mubr.f32.mxu0 0.0
        %642 = vmatmul.mubr.f32.gmra.mxu0 %v382
        %v643 = vpop.f32.mrf.mxu0
        %v644 = vadd.f32 %v244, %v643
        %v645 = vpop.f32.mrf.mxu0
        %646 = vmatprep.mubr.f32.mxu0 0.0
        %647 = vmatmul.mubr.f32.gmra.mxu0 %v385
        %v648 = vpop.f32.mrf.mxu0
        %v649 = vadd.f32 %v244, %v648
        %v650 = vpop.f32.mrf.mxu0
        %651 = vmatprep.mubr.f32.mxu0 0.0
        %652 = vmatmul.mubr.f32.gmra.mxu0 %v388
        %v653 = vpop.f32.mrf.mxu0
        %v654 = vadd.f32 %v244, %v653
        %v655 = vpop.f32.mrf.mxu0
        %656 = vmatprep.mubr.f32.mxu0 0.0
        %657 = vmatmul.mubr.f32.gmra.mxu0 %v391
        %v658 = vpop.f32.mrf.mxu0
        %v659 = vadd.f32 %v244, %v658
        %v660 = vpop.f32.mrf.mxu0
        %661 = vmatprep.mubr.f32.mxu0 0.0
        %662 = vmatmul.mubr.f32.gmra.mxu0 %v394
        %v663 = vpop.f32.mrf.mxu0
        %v664 = vadd.f32 %v244, %v663
        %v665 = vpop.f32.mrf.mxu0
        %666 = vmatprep.mubr.f32.mxu0 0.0
        %667 = vmatmul.mubr.f32.gmra.mxu0 %v397
        %v668 = vpop.f32.mrf.mxu0
        %v669 = vadd.f32 %v244, %v668
        %v670 = vpop.f32.mrf.mxu0
        %671 = vmatprep.mubr.f32.mxu0 0.0
        %672 = vmatmul.mubr.f32.gmra.mxu0 %v400
        %v673 = vpop.f32.mrf.mxu0
        %v674 = vadd.f32 %v244, %v673
        %v675 = vpop.f32.mrf.mxu0
        %676 = vmatprep.mubr.f32.mxu0 0.0
        %677 = vmatmul.mubr.f32.gmra.mxu0 %v403
        %v678 = vpop.f32.mrf.mxu0
        %v679 = vadd.f32 %v244, %v678
        %v680 = vpop.f32.mrf.mxu0
        %681 = vmatprep.mubr.f32.mxu0 0.0
        %682 = vmatmul.mubr.f32.gmra.mxu0 %v406
        %v683 = vpop.f32.mrf.mxu0
        %v684 = vadd.f32 %v244, %v683
        %v685 = vpop.f32.mrf.mxu0
        %686 = vmatprep.mubr.f32.mxu0 0.0
        %687 = vmatmul.mubr.f32.gmra.mxu0 %v409
        %v688 = vpop.f32.mrf.mxu0
        %v689 = vadd.f32 %v244, %v688
        %v690 = vpop.f32.mrf.mxu0
        %691 = vmatprep.mubr.f32.mxu0 0.0
        %692 = vmatmul.mubr.f32.gmra.mxu0 %v412
        %v693 = vpop.f32.mrf.mxu0
        %v694 = vadd.f32 %v244, %v693
        %v695 = vpop.f32.mrf.mxu0
        %696 = vmatprep.mubr.f32.mxu0 0.0
        %697 = vmatmul.mubr.f32.gmra.mxu0 %v415
        %v698 = vpop.f32.mrf.mxu0
        %v699 = vadd.f32 %v244, %v698
        %v700 = vpop.f32.mrf.mxu0
        %701 = vmatprep.mubr.f32.mxu0 0.0
        %702 = vmatmul.mubr.f32.gmra.mxu0 %v418
        %v703 = vpop.f32.mrf.mxu0
        %v704 = vadd.f32 %v244, %v703
        %v705 = vpop.f32.mrf.mxu0
        %706 = vmatprep.mubr.f32.mxu0 0.0
        %707 = vmatmul.mubr.f32.gmra.mxu0 %v421
        %v708 = vpop.f32.mrf.mxu0
        %v709 = vadd.f32 %v244, %v708
        %v710 = vpop.f32.mrf.mxu0
        %711 = vmatprep.mubr.f32.mxu0 0.0
        %712 = vmatmul.mubr.f32.gmra.mxu0 %v424
        %v713 = vpop.f32.mrf.mxu0
        %v714 = vadd.f32 %v244, %v713
        %v715 = vpop.f32.mrf.mxu0
        %716 = vmatprep.mubr.f32.mxu0 0.0
        %717 = vmatmul.mubr.f32.gmra.mxu0 %v427
        %v718 = vpop.f32.mrf.mxu0
        %v719 = vadd.f32 %v244, %v718
        %v720 = vpop.f32.mrf.mxu0
        %721 = vmatprep.mubr.f32.mxu0 0.0
        %722 = vmatmul.mubr.f32.gmra.mxu0 %v430
        %v723 = vpop.f32.mrf.mxu0
        %v724 = vadd.f32 %v244, %v723
        %v725 = vpop.f32.mrf.mxu0
        %726 = vmatprep.mubr.f32.mxu0 0.0
        %727 = vmatmul.mubr.f32.gmra.mxu0 %v433
        %v728 = vpop.f32.mrf.mxu0
        %v729 = vadd.f32 %v244, %v728
        %v730 = vpop.f32.mrf.mxu0
        %731 = vmatprep.mubr.f32.mxu0 0.0
        %732 = vmatmul.mubr.f32.gmra.mxu0 %v436
        %v733 = vpop.f32.mrf.mxu0
        %v734 = vadd.f32 %v244, %v733
        %v735 = vpop.f32.mrf.mxu0
        %736 = vmatprep.mubr.f32.mxu0 0.0
        %737 = vmatmul.mubr.f32.gmra.mxu0 %v439
        %v738 = vpop.f32.mrf.mxu0
        %v739 = vadd.f32 %v244, %v738
        %v740 = vpop.f32.mrf.mxu0
        %741 = vmatprep.mubr.f32.mxu0 0.0
        %742 = vmatmul.mubr.f32.gmra.mxu0 %v442
        %v743 = vpop.f32.mrf.mxu0
        %v744 = vadd.f32 %v244, %v743
        %v745 = vpop.f32.mrf.mxu0
        %746 = vmatprep.mubr.f32.mxu0 0.0
        %747 = vmatmul.mubr.f32.gmra.mxu0 %v445
        %v748 = vpop.f32.mrf.mxu0
        %v749 = vadd.f32 %v244, %v748
        %v750 = vpop.f32.mrf.mxu0
        %751 = vmatprep.mubr.f32.mxu0 0.0
        %752 = vmatmul.mubr.f32.gmra.mxu0 %v448
        %v753 = vpop.f32.mrf.mxu0
        %v754 = vadd.f32 %v244, %v753
        %v755 = vpop.f32.mrf.mxu0
        %756 = vmatprep.mubr.f32.mxu0 0.0
        %757 = vmatmul.mubr.f32.gmra.mxu0 %v451
        %v758 = vpop.f32.mrf.mxu0
        %v759 = vadd.f32 %v244, %v758
        %v760 = vpop.f32.mrf.mxu0
        %761 = vmatprep.mubr.f32.mxu0 0.0
        %762 = vmatmul.mubr.f32.gmra.mxu0 %v454
        %v763 = vpop.f32.mrf.mxu0
        %v764 = vadd.f32 %v244, %v763
        %v765 = vpop.f32.mrf.mxu0
        %766 = vmatprep.mubr.f32.mxu0 0.0
        %767 = vmatmul.mubr.f32.gmra.mxu0 %v457
        %v768 = vpop.f32.mrf.mxu0
        %v769 = vadd.f32 %v244, %v768
        %v770 = vpop.f32.mrf.mxu0
        %771 = vmatprep.mubr.f32.mxu0 0.0
        %772 = vmatmul.mubr.f32.gmra.mxu0 %v460
        %v773 = vpop.f32.mrf.mxu0
        %v774 = vadd.f32 %v244, %v773
        %v775 = vpop.f32.mrf.mxu0
        %776 = vmatprep.mubr.f32.mxu0 0.0
        %777 = vmatmul.mubr.f32.gmra.mxu0 %v463
        %v778 = vpop.f32.mrf.mxu0
        %v779 = vadd.f32 %v244, %v778
        %v780 = vpop.f32.mrf.mxu0
        %781 = vmatprep.mubr.f32.mxu0 0.0
        %782 = vmatmul.mubr.f32.gmra.mxu0 %v466
        %v783 = vpop.f32.mrf.mxu0
        %v784 = vadd.f32 %v244, %v783
        %v785 = vpop.f32.mrf.mxu0
        %786 = vmatprep.mubr.f32.mxu0 0.0
        %787 = vmatmul.mubr.f32.gmra.mxu0 %v469
        %v788 = vpop.f32.mrf.mxu0
        %v789 = vadd.f32 %v244, %v788
        %v790 = vpop.f32.mrf.mxu0
        %791 = vmatprep.mubr.f32.mxu0 0.0
        %792 = vmatmul.mubr.f32.gmra.mxu0 %v472
        %v793 = vpop.f32.mrf.mxu0
        %v794 = vadd.f32 %v244, %v793
        %v795 = vpop.f32.mrf.mxu0
        %796 = vmatprep.mubr.f32.mxu0 0.0
        %797 = vmatmul.mubr.f32.gmra.mxu0 %v475
        %v798 = vpop.f32.mrf.mxu0
        %v799 = vadd.f32 %v244, %v798
        %v800 = vpop.f32.mrf.mxu0
        %801 = vmatprep.mubr.f32.mxu0 0.0
        %802 = vmatmul.mubr.f32.gmra.mxu0 %v478
        %v803 = vpop.f32.mrf.mxu0
        %v804 = vadd.f32 %v244, %v803
        %v805 = vpop.f32.mrf.mxu0
        %806 = vmatprep.mubr.f32.mxu0 0.0
        %807 = vmatmul.mubr.f32.gmra.mxu0 %v481
        %v808 = vpop.f32.mrf.mxu0
        %v809 = vadd.f32 %v244, %v808
        %v810 = vpop.f32.mrf.mxu0
        %811 = vmatprep.mubr.f32.mxu0 0.0
        %812 = vmatmul.mubr.f32.gmra.mxu0 %v484
        %v813 = vpop.f32.mrf.mxu0
        %v814 = vadd.f32 %v244, %v813
        %v815 = vpop.f32.mrf.mxu0
        %816 = vmatprep.mubr.f32.mxu0 0.0
        %817 = vmatmul.mubr.f32.gmra.mxu0 %v487
        %v818 = vpop.f32.mrf.mxu0
        %v819 = vadd.f32 %v244, %v818
        %v820 = vpop.f32.mrf.mxu0
        %821 = vmatprep.mubr.f32.mxu0 0.0
        %822 = vmatmul.mubr.f32.gmra.mxu0 %v490
        %v823 = vpop.f32.mrf.mxu0
        %v824 = vadd.f32 %v244, %v823
        %v825 = vpop.f32.mrf.mxu0
        %826 = vmatprep.mubr.f32.mxu0 0.0
        %827 = vmatmul.mubr.f32.gmra.mxu0 %v493
        %v828 = vpop.f32.mrf.mxu0
        %v829 = vadd.f32 %v244, %v828
        %v830 = vpop.f32.mrf.mxu0
        %831 = vmatprep.mubr.f32.mxu0 0.0
        %832 = vmatmul.mubr.f32.gmra.mxu0 %v496
        %v833 = vpop.f32.mrf.mxu0
        %v834 = vadd.f32 %v244, %v833
        %v835 = vpop.f32.mrf.mxu0
        %836 = vmatprep.mubr.f32.mxu0 0.0
        %837 = vmatmul.mubr.f32.gmra.mxu0 %v499
        %v838 = vpop.f32.mrf.mxu0
        %v839 = vadd.f32 %v244, %v838
        %v840 = vpop.f32.mrf.mxu0
        %841 = vmatprep.mubr.f32.mxu0 0.0
        %842 = vmatmul.mubr.f32.gmra.mxu0 %v502
        %v843 = vpop.f32.mrf.mxu0
        %v844 = vadd.f32 %v244, %v843
        %v845 = vpop.f32.mrf.mxu0
        %846 = vmatprep.mubr.f32.mxu0 0.0
        %847 = vmatmul.mubr.f32.gmra.mxu0 %v505
        %v848 = vpop.f32.mrf.mxu0
        %v849 = vadd.f32 %v244, %v848
        %v850 = vpop.f32.mrf.mxu0
        %851 = vmatprep.mubr.f32.mxu0 0.0
        %852 = vmatmul.mubr.f32.gmra.mxu0 %v508
        %v853 = vpop.f32.mrf.mxu0
        %v854 = vadd.f32 %v244, %v853
        %v855 = vpop.f32.mrf.mxu0
        %856 = vmatprep.mubr.f32.mxu0 0.0
        %857 = vmatmul.mubr.f32.gmra.mxu0 %v511
        %v858 = vpop.f32.mrf.mxu0
        %v859 = vadd.f32 %v244, %v858
        %v860 = vpop.f32.mrf.mxu0
        %861 = vmatprep.mubr.f32.mxu0 0.0
        %862 = vmatmul.mubr.f32.gmra.mxu0 %v514
        %v863 = vpop.f32.mrf.mxu0
        %v864 = vadd.f32 %v244, %v863
        %v865 = vpop.f32.mrf.mxu0
        %866 = vmatprep.mubr.f32.mxu0 0.0
        %867 = vmatmul.mubr.f32.gmra.mxu0 %v517
        %v868 = vpop.f32.mrf.mxu0
        %v869 = vadd.f32 %v244, %v868
        %v870 = vpop.f32.mrf.mxu0
        %871 = vmatprep.mubr.f32.mxu0 0.0
        %872 = vmatmul.mubr.f32.gmra.mxu0 %v520
        %v873 = vpop.f32.mrf.mxu0
        %v874 = vadd.f32 %v244, %v873
        %v875 = vpop.f32.mrf.mxu0
        %876 = vmatprep.mubr.f32.mxu0 0.0
        %877 = vmatmul.mubr.f32.gmra.mxu0 %v523
        %v878 = vpop.f32.mrf.mxu0
        %v879 = vadd.f32 %v244, %v878
        %v880 = vpop.f32.mrf.mxu0
        %881 = vmatprep.mubr.f32.mxu0 0.0
        %882 = vmatmul.mubr.f32.gmra.mxu0 %v526
        %v883 = vpop.f32.mrf.mxu0
        %v884 = vadd.f32 %v244, %v883
        %v885 = vpop.f32.mrf.mxu0
        %886 = vmatprep.mubr.f32.mxu0 0.0
        %887 = vmatmul.mubr.f32.gmra.mxu0 %v529
        %v888 = vpop.f32.mrf.mxu0
        %v889 = vadd.f32 %v244, %v888
        %v890 = vpop.f32.mrf.mxu0
        %891 = vmatprep.mubr.f32.mxu0 0.0
        %892 = vmatmul.mubr.f32.gmra.mxu0 %v532
        %v893 = vpop.f32.mrf.mxu0
        %v894 = vadd.f32 %v244, %v893
        %v895 = vpop.f32.mrf.mxu0
        %896 = vmatprep.mubr.f32.mxu0 0.0
        %897 = vmatmul.mubr.f32.gmra.mxu0 %v535
        %v898 = vpop.f32.mrf.mxu0
        %v899 = vadd.f32 %v244, %v898
        %v900 = vpop.f32.mrf.mxu0
        %901 = vmatprep.mubr.f32.mxu0 0.0
        %902 = vmatmul.mubr.f32.gmra.mxu0 %v538
        %v903 = vpop.f32.mrf.mxu0
        %v904 = vadd.f32 %v244, %v903
        %v905 = vpop.f32.mrf.mxu0
        %906 = vmatprep.mubr.f32.mxu0 0.0
        %907 = vmatmul.mubr.f32.gmra.mxu0 %v541
        %v908 = vpop.f32.mrf.mxu0
        %v909 = vadd.f32 %v244, %v908
        %v910 = vpop.f32.mrf.mxu0
        %911 = vmatprep.mubr.f32.mxu0 0.0
        %912 = vmatmul.mubr.f32.gmra.mxu0 %v544
        %v913 = vpop.f32.mrf.mxu0
        %v914 = vadd.f32 %v244, %v913
        %v915 = vpop.f32.mrf.mxu0
        %916 = vmatprep.mubr.f32.mxu0 0.0
        %917 = vmatmul.mubr.f32.gmra.mxu0 %v547
        %v918 = vpop.f32.mrf.mxu0
        %v919 = vadd.f32 %v244, %v918
        %v920 = vpop.f32.mrf.mxu0
        %921 = vmatprep.mubr.f32.mxu0 0.0
        %922 = vmatmul.mubr.f32.gmra.mxu0 %v550
        %v923 = vpop.f32.mrf.mxu0
        %v924 = vadd.f32 %v244, %v923
        %v925 = vpop.f32.mrf.mxu0
        %926 = vmatprep.mubr.f32.mxu0 0.0
        %927 = vmatmul.mubr.f32.gmra.mxu0 %v553
        %v928 = vpop.f32.mrf.mxu0
        %v929 = vadd.f32 %v244, %v928
        %v930 = vpop.f32.mrf.mxu0
        %931 = vmatprep.mubr.f32.mxu0 0.0
        %932 = vmatmul.mubr.f32.gmra.mxu0 %v556
        %v933 = vpop.f32.mrf.mxu0
        %v934 = vadd.f32 %v244, %v933
        %v935 = vpop.f32.mrf.mxu0
        %936 = vmatprep.mubr.f32.mxu0 0.0
        %937 = vmatmul.mubr.f32.gmra.mxu0 %v559
        %v938 = vpop.f32.mrf.mxu0
        %v939 = vadd.f32 %v244, %v938
        %v940 = vpop.f32.mrf.mxu0
        %941 = vmatprep.mubr.f32.mxu0 0.0
        %942 = vmatmul.mubr.f32.gmra.mxu0 %v562
        %v943 = vpop.f32.mrf.mxu0
        %v944 = vadd.f32 %v244, %v943
        %v945 = vpop.f32.mrf.mxu0
        %946 = vmatprep.mubr.f32.mxu0 0.0
        %947 = vmatmul.mubr.f32.gmra.mxu0 %v565
        %v948 = vpop.f32.mrf.mxu0
        %v949 = vadd.f32 %v244, %v948
        %v950 = vpop.f32.mrf.mxu0
        %951 = vmatprep.mubr.f32.mxu0 0.0
        %952 = vmatmul.mubr.f32.gmra.mxu0 %v568
        %v953 = vpop.f32.mrf.mxu0
        %v954 = vadd.f32 %v244, %v953
        %v955 = vpop.f32.mrf.mxu0
        %956 = vmatprep.mubr.f32.mxu0 0.0
        %957 = vmatmul.mubr.f32.gmra.mxu0 %v571
        %v958 = vpop.f32.mrf.mxu0
        %v959 = vadd.f32 %v244, %v958
        %v960 = vpop.f32.mrf.mxu0
        %961 = vdwg.mxu0
        %vm962 = vcmask 261120
        %963 = vst.msk [vmem:[%s234] sm:$0xff] %vm962, %v644
        %964 = vst.msk [vmem:[%s234 + $0x8] sm:$0xff] %vm962, %v649
        %965 = vst.msk [vmem:[%s234 + $0x10] sm:$0xff] %vm962, %v654
        %966 = vst.msk [vmem:[%s234 + $0x18] sm:$0xff] %vm962, %v659
        %967 = vst.msk [vmem:[%s234 + $0x20] sm:$0xff] %vm962, %v664
        %968 = vst.msk [vmem:[%s234 + $0x28] sm:$0xff] %vm962, %v669
        %969 = vst.msk [vmem:[%s234 + $0x30] sm:$0xff] %vm962, %v674
        %970 = vst.msk [vmem:[%s234 + $0x38] sm:$0xff] %vm962, %v679
        %971 = vst.msk [vmem:[%s234 + $0x40] sm:$0xff] %vm962, %v684
        %972 = vst.msk [vmem:[%s234 + $0x48] sm:$0xff] %vm962, %v689
        %973 = vst.msk [vmem:[%s234 + $0x50] sm:$0xff] %vm962, %v694
        %974 = vst.msk [vmem:[%s234 + $0x58] sm:$0xff] %vm962, %v699
        %975 = vst.msk [vmem:[%s234 + $0x60] sm:$0xff] %vm962, %v704
        %976 = vst.msk [vmem:[%s234 + $0x68] sm:$0xff] %vm962, %v709
        %977 = vst.msk [vmem:[%s234 + $0x70] sm:$0xff] %vm962, %v714
        %978 = vst.msk [vmem:[%s234 + $0x78] sm:$0xff] %vm962, %v719
        %979 = vst.msk [vmem:[%s234 + $0x80] sm:$0xff] %vm962, %v724
        %980 = vst.msk [vmem:[%s234 + $0x88] sm:$0xff] %vm962, %v729
        %981 = vst.msk [vmem:[%s234 + $0x90] sm:$0xff] %vm962, %v734
        %982 = vst.msk [vmem:[%s234 + $0x98] sm:$0xff] %vm962, %v739
        %983 = vst.msk [vmem:[%s234 + $0xa0] sm:$0xff] %vm962, %v744
        %984 = vst.msk [vmem:[%s234 + $0xa8] sm:$0xff] %vm962, %v749
        %985 = vst.msk [vmem:[%s234 + $0xb0] sm:$0xff] %vm962, %v754
        %986 = vst.msk [vmem:[%s234 + $0xb8] sm:$0xff] %vm962, %v759
        %987 = vst.msk [vmem:[%s234 + $0xc0] sm:$0xff] %vm962, %v764
        %988 = vst.msk [vmem:[%s234 + $0xc8] sm:$0xff] %vm962, %v769
        %989 = vst.msk [vmem:[%s234 + $0xd0] sm:$0xff] %vm962, %v774
        %990 = vst.msk [vmem:[%s234 + $0xd8] sm:$0xff] %vm962, %v779
        %991 = vst.msk [vmem:[%s234 + $0xe0] sm:$0xff] %vm962, %v784
        %992 = vst.msk [vmem:[%s234 + $0xe8] sm:$0xff] %vm962, %v789
        %993 = vst.msk [vmem:[%s234 + $0xf0] sm:$0xff] %vm962, %v794
        %994 = vst.msk [vmem:[%s234 + $0xf8] sm:$0xff] %vm962, %v799
        %995 = vst.msk [vmem:[%s234 + $0x100] sm:$0xff] %vm962, %v804
        %996 = vst.msk [vmem:[%s234 + $0x108] sm:$0xff] %vm962, %v809
        %997 = vst.msk [vmem:[%s234 + $0x110] sm:$0xff] %vm962, %v814
        %998 = vst.msk [vmem:[%s234 + $0x118] sm:$0xff] %vm962, %v819
        %999 = vst.msk [vmem:[%s234 + $0x120] sm:$0xff] %vm962, %v824
        %1000 = vst.msk [vmem:[%s234 + $0x128] sm:$0xff] %vm962, %v829
        %1001 = vst.msk [vmem:[%s234 + $0x130] sm:$0xff] %vm962, %v834
        %1002 = vst.msk [vmem:[%s234 + $0x138] sm:$0xff] %vm962, %v839
        %1003 = vst.msk [vmem:[%s234 + $0x140] sm:$0xff] %vm962, %v844
        %1004 = vst.msk [vmem:[%s234 + $0x148] sm:$0xff] %vm962, %v849
        %1005 = vst.msk [vmem:[%s234 + $0x150] sm:$0xff] %vm962, %v854
        %1006 = vst.msk [vmem:[%s234 + $0x158] sm:$0xff] %vm962, %v859
        %1007 = vst.msk [vmem:[%s234 + $0x160] sm:$0xff] %vm962, %v864
        %1008 = vst.msk [vmem:[%s234 + $0x168] sm:$0xff] %vm962, %v869
        %1009 = vst.msk [vmem:[%s234 + $0x170] sm:$0xff] %vm962, %v874
        %1010 = vst.msk [vmem:[%s234 + $0x178] sm:$0xff] %vm962, %v879
        %1011 = vst.msk [vmem:[%s234 + $0x180] sm:$0xff] %vm962, %v884
        %1012 = vst.msk [vmem:[%s234 + $0x188] sm:$0xff] %vm962, %v889
        %1013 = vst.msk [vmem:[%s234 + $0x190] sm:$0xff] %vm962, %v894
        %1014 = vst.msk [vmem:[%s234 + $0x198] sm:$0xff] %vm962, %v899
        %1015 = vst.msk [vmem:[%s234 + $0x1a0] sm:$0xff] %vm962, %v904
        %1016 = vst.msk [vmem:[%s234 + $0x1a8] sm:$0xff] %vm962, %v909
        %1017 = vst.msk [vmem:[%s234 + $0x1b0] sm:$0xff] %vm962, %v914
        %1018 = vst.msk [vmem:[%s234 + $0x1b8] sm:$0xff] %vm962, %v919
        %1019 = vst.msk [vmem:[%s234 + $0x1c0] sm:$0xff] %vm962, %v924
        %1020 = vst.msk [vmem:[%s234 + $0x1c8] sm:$0xff] %vm962, %v929
        %1021 = vst.msk [vmem:[%s234 + $0x1d0] sm:$0xff] %vm962, %v934
        %1022 = vst.msk [vmem:[%s234 + $0x1d8] sm:$0xff] %vm962, %v939
        %1023 = vst.msk [vmem:[%s234 + $0x1e0] sm:$0xff] %vm962, %v944
        %1024 = vst.msk [vmem:[%s234 + $0x1e8] sm:$0xff] %vm962, %v949
        %1025 = vst.msk [vmem:[%s234 + $0x1f0] sm:$0xff] %vm962, %v954
        %1026 = vst.msk [vmem:[%s234 + $0x1f8] sm:$0xff] %vm962, %v959
        %s1027 = smul.u32 64, %s21
        %p1028 = scmp.lt.s32.totalorder %s20, 1
        %s1029 = scalar_select %p1028, %s20, 1
        %p1030 = scmp.lt.s32.totalorder %s1027, 255
        %s1031 = scalar_select %p1030, %s1027, 255
        %s1032 = smul.addr %s1029, 256
        %s1033 = sadd.s32 %s1031, %s1032
        %s1034 = smul.addr %s1033, 8
        %s1035 = scalar_lea.vmem %s3, %s1034
        // Predicated region
        $region41: #{tpu_custom_call.1} parent=31 // pred_check
          %p1036 = pneg %p118
        $region42: #{tpu_custom_call.1} parent=31 // pred_check_branch
          %1038 = sbr.rel (%p1036) target = $region44
        $region43: #{tpu_custom_call.1} parent=31 // pred_region
          %s1039 = smul.u32 64, %s21
        $region44: #{tpu_custom_call.1} parent=31 // pred_fallthru
          _
      $region32: #{tpu_custom_call.1} parent=5 // pred_fallthru
        _
      %p1040 = scmp.le.s32.totalorder 2, %s11
      // Predicated region
      $region45: #{tpu_custom_call.1} parent=5 // pred_check
        %p1041 = pneg %p1040
      $region46: #{tpu_custom_call.1} parent=5 // pred_check_branch
        %1043 = sbr.rel (%p1041) target = $region48
      $region47: #{tpu_custom_call.1} parent=5 // pred_region
        %s1044 = ssub.s32 %s11, 2
        // Predicated region
        $region49: #{tpu_custom_call.1} parent=47 // pred_check
          %p1045 = pneg %p124
        $region50: #{tpu_custom_call.1} parent=47 // pred_check_branch
          %1047 = sbr.rel (%p1045) target = $region52
        $region51: #{tpu_custom_call.1} parent=47 // pred_region
          %s1048 = smul.u32 64, %s23
          %p1049 = scmp.lt.s32.totalorder %s22, 1
          %s1050 = scalar_select %p1049, %s22, 1
          %p1051 = scmp.lt.s32.totalorder %s1048, 255
          %s1052 = scalar_select %p1051, %s1048, 255
          %s1053 = smul.addr %s1050, 256
          %s1054 = sadd.s32 %s1052, %s1053
          %s1055 = smul.addr %s1054, 8
          %s1056 = scalar_lea.vmem %s3, %s1055
        $region52: #{tpu_custom_call.1} parent=47 // pred_fallthru
          _
      $region48: #{tpu_custom_call.1} parent=5 // pred_fallthru
        _
    $region6: #{tpu_custom_call.1} parent=1 // loop_footer
      %s15 = sadd.s32 1, %s11
    $region7: #{tpu_custom_call.1} parent=1 // loop_footer_branch
      %10 = sbr.rel target = $region3
    $region8: #{tpu_custom_call.1} parent=1 // loop_exit
      _
    %1057 = vsyncpa [#allocation3], 1
    %s1058 = scalar_lea.sflag [#allocation3], 1
    %1059 = vsyncpa %s1058, 1
    %1060 = vsyncpa [#allocation5], 1

</llo_original>
